<compile_context>
chip_gen: v6e
topology: v6e:2x2x1
jax: 0.10.0
libtpu: 0.0.40
codegen_flags: <defaults>
</compile_context>

<pallas_src>
import jax
import jax.numpy as jnp
from jax.experimental import pallas as pl
from jax.experimental.pallas import tpu as pltpu

EPS = 1e-5
NEG_SLOPE = 0.01  # PyTorch LeakyReLU default


# --------------------------------------------------------------------------- #
# Kernels
# --------------------------------------------------------------------------- #
def _fused_kernel(x_ref, w_ref, g_ref, b_ref, o_ref):
    # x: (B, IN) resident | w: (IN, tn) bf16 | gamma/beta: (1, tn) f32 | o: (B, tn)
    xb = x_ref[...].astype(jnp.bfloat16)
    y = jnp.dot(xb, w_ref[...], preferred_element_type=jnp.float32)  # (B, tn) f32
    inv_b = jnp.float32(1.0 / x_ref.shape[0])
    mean = jnp.sum(y, axis=0, keepdims=True) * inv_b
    d = y - mean
    var = jnp.sum(d * d, axis=0, keepdims=True) * inv_b            # centered (2-pass)
    s = g_ref[...] * jax.lax.rsqrt(var + EPS)
    y_bn = d * s + b_ref[...]
    o_ref[...] = jnp.where(y_bn >= 0.0, y_bn, NEG_SLOPE * y_bn).astype(o_ref.dtype)


def _ktiled_kernel(x_ref, w_ref, g_ref, b_ref, o_ref, acc_ref):
    # x: (B, tk) | w: (tk, tn) bf16 | acc: (B, tn) f32 | grid = (nj, nk), K last
    k = pl.program_id(1)
    part = jnp.dot(x_ref[...].astype(jnp.bfloat16), w_ref[...],
                   preferred_element_type=jnp.float32)

    @pl.when(k == 0)
    def _():
        acc_ref[...] = part            # write, not zero-then-add

    @pl.when(k > 0)
    def _():
        acc_ref[...] += part

    @pl.when(k == pl.num_programs(1) - 1)
    def _():
        y = acc_ref[...]
        inv_b = jnp.float32(1.0 / y.shape[0])
        mean = jnp.sum(y, axis=0, keepdims=True) * inv_b
        d = y - mean
        var = jnp.sum(d * d, axis=0, keepdims=True) * inv_b
        s = g_ref[...] * jax.lax.rsqrt(var + EPS)
        y_bn = d * s + b_ref[...]
        o_ref[...] = jnp.where(y_bn >= 0.0, y_bn, NEG_SLOPE * y_bn).astype(o_ref.dtype)


# --------------------------------------------------------------------------- #
# Parameter prep (hoisted out of the per-forward path)
# --------------------------------------------------------------------------- #
def _round_up(x, m):
    return ((x + m - 1) // m) * m


def _vmem_budget_bytes():
    # Generation aware: ~64 MiB usable target on v5e/v6e (128 MiB physical),
    # ~32 MiB on v7x (64 MiB physical). Conservative fallback if query fails.
    try:
        phys = int(pltpu.get_tpu_info().vmem_capacity_bytes)
        if phys <= 0:
            raise ValueError
    except Exception:
        phys = 64 << 20
    return min(phys // 2, 96 << 20)


def _vmem_limit(budget):
    return int(min(max(budget, 32 << 20), 96 << 20))


def _pick_tn(out_p, usable, bytes_fn):
    """Largest lane-dense (128-multiple) divisor of out_p that fits the budget,
    keeping >= 2 OUT tiles when out_p >= 256 so v7x's two TensorCores both work."""
    units = out_p // 128
    for m in range(units, 0, -1):
        if units % m:
            continue
        tn = 128 * m
        if out_p >= 256 and out_p // tn < 2:
            continue
        if bytes_fn(tn) <= usable:
            return tn
    return None


def _pick_tk(in_p, usable, bytes_fn):
    units = in_p // 128
    for m in range(units, 0, -1):
        if units % m:
            continue
        tk = 128 * m
        if bytes_fn(tk) <= usable:
            return tk
    return 128


def prepare_params(weight, gamma, beta, bias=None, *, max_batch=256,
                   vmem_budget_bytes=None):
    """One-time prep. weight: (OUT, IN) PyTorch layout; gamma/beta: (OUT,).

    `bias` is accepted for API parity but unused: training-mode BatchNorm1d
    subtracts the per-feature batch mean, which cancels any constant bias.
    `max_batch` is the largest batch the VMEM budgeting should assume.
    """
    del bias
    weight = jnp.asarray(weight)
    OUT, IN = weight.shape
    OUT_p = _round_up(OUT, 128)

    budget = int(vmem_budget_bytes) if vmem_budget_bytes is not None else _vmem_budget_bytes()
    usable = int(budget * 0.75)     # headroom for compute temps / compiler scratch

    g2 = jnp.ones((1, OUT_p), jnp.float32).at[0, :OUT].set(gamma.astype(jnp.float32))
    b2 = jnp.zeros((1, OUT_p), jnp.float32).at[0, :OUT].set(beta.astype(jnp.float32))
    w_bf = weight.astype(jnp.bfloat16)

    # ---- primary fused path: x resident, one full-K dot per OUT tile -------
    def fused_bytes(tn):
        return (2 * IN * tn * 2                 # bf16 weight tile, double-buffered
                + 2 * max_batch * IN * 4        # resident x (budgeted for 2 bufs)
                + 2 * max_batch * tn * 4        # output tile, double-buffered
                + 4 * tn * 4)                   # gamma / beta

    tn = _pick_tn(OUT_p, usable, fused_bytes)
    if tn is not None:
        nj = OUT_p // tn
        w_t = jnp.zeros((IN, OUT_p), jnp.bfloat16).at[:, :OUT].set(w_bf.T)
        # Tile-contiguous layout: each (IN, tn) weight tile is one contiguous DMA.
        w_tiles = w_t.reshape(IN, nj, tn).transpose(1, 0, 2)
        return dict(mode="fused", w=w_tiles, gamma=g2, beta=b2,
                    in_features=IN, out_features=OUT, out_p=OUT_p, tn=tn,
                    vmem_limit=_vmem_limit(budget))

    # ---- K-tiled fallback (very large IN / batch) ---------------------------
    IN_p = _round_up(IN, 128)

    def kt_bytes(tk, tn_):
        return (2 * max_batch * tk * 4 + 2 * tk * tn_ * 2
                + 2 * max_batch * tn_ * 4 + max_batch * tn_ * 4 + 4 * tn_ * 4)

    tn = _pick_tn(OUT_p, usable, lambda t: kt_bytes(128, t))
    if tn is None:
        tn = 128
    tk = _pick_tk(IN_p, usable, lambda t: kt_bytes(t, tn))
    w_t = jnp.zeros((IN_p, OUT_p), jnp.bfloat16).at[:IN, :OUT].set(w_bf.T)
    return dict(mode="ktiled", w=w_t, gamma=g2, beta=b2,
                in_features=IN, out_features=OUT, out_p=OUT_p, in_p=IN_p,
                tn=tn, tk=tk, vmem_limit=_vmem_limit(budget))


# --------------------------------------------------------------------------- #
# Forward
# --------------------------------------------------------------------------- #
def linear_fc_forward(x, params):
    B = x.shape[0]
    OUT, OUT_p = params["out_features"], params["out_p"]
    tn = params["tn"]
    gamma, beta = params["gamma"], params["beta"]
    vmem = params["vmem_limit"]

    if params["mode"] == "fused":
        IN = params["in_features"]
        assert x.shape[1] == IN
        w = params["w"]                               # (nj, IN, tn) bf16
        nj = OUT_p // tn
        out_p = pl.pallas_call(
            _fused_kernel,
            out_shape=jax.ShapeDtypeStruct((B, OUT_p), x.dtype),
            grid_spec=pltpu.PrefetchScalarGridSpec(
                num_scalar_prefetch=0,
                grid=(nj,),
                in_specs=[
                    pl.BlockSpec((B, IN), lambda j: (0, 0)),          # x resident
                    pl.BlockSpec((None, IN, tn), lambda j: (j, 0, 0)),  # weight tile
                    pl.BlockSpec((1, tn), lambda j: (0, j)),          # gamma
                    pl.BlockSpec((1, tn), lambda j: (0, j)),          # beta
                ],
                out_specs=pl.BlockSpec((B, tn), lambda j: (0, j)),
            ),
            compiler_params=pltpu.CompilerParams(
                dimension_semantics=("parallel",),
                vmem_limit_bytes=vmem,
            ),
        )(x, w, gamma, beta)
    else:
        IN, IN_p, tk = params["in_features"], params["in_p"], params["tk"]
        w = params["w"]                               # (IN_p, OUT_p) bf16
        if IN_p != IN:
            # Rare fallback path only: pad contraction axis to the tile grid.
            x = jnp.zeros((B, IN_p), x.dtype).at[:, :IN].set(x)
        nj, nk = OUT_p // tn, IN_p // tk
        out_p = pl.pallas_call(
            _ktiled_kernel,
            out_shape=jax.ShapeDtypeStruct((B, OUT_p), x.dtype),
            grid_spec=pltpu.PrefetchScalarGridSpec(
                num_scalar_prefetch=0,
                grid=(nj, nk),                        # K (reduction) axis last
                in_specs=[
                    pl.BlockSpec((B, tk), lambda j, k: (0, k)),
                    pl.BlockSpec((tk, tn), lambda j, k: (k, j)),
                    pl.BlockSpec((1, tn), lambda j, k: (0, j)),
                    pl.BlockSpec((1, tn), lambda j, k: (0, j)),
                ],
                out_specs=pl.BlockSpec((B, tn), lambda j, k: (0, j)),
                scratch_shapes=[pltpu.VMEM((B, tn), jnp.float32)],
            ),
            compiler_params=pltpu.CompilerParams(
                dimension_semantics=("parallel", "arbitrary"),
                vmem_limit_bytes=vmem,
            ),
        )(x, w, gamma, beta)

    if OUT_p != OUT:
        out_p = out_p[:, :OUT]
    return out_p


# --------------------------------------------------------------------------- #
# Pure-JAX reference (matches the PyTorch forward)
# --------------------------------------------------------------------------- #
def _reference(x, weight, bias, gamma, beta, *, bf16_inputs=False):
    if bf16_inputs:
        x = x.astype(jnp.bfloat16).astype(jnp.float32)
        weight = weight.astype(jnp.bfloat16).astype(jnp.float32)
    y = jnp.dot(x, weight.T, precision=jax.lax.Precision.HIGHEST) + bias
    m = y.mean(axis=0, keepdims=True)
    v = ((y - m) ** 2).mean(axis=0, keepdims=True)
    y = gamma * (y - m) / jnp.sqrt(v + EPS) + beta
    return jnp.where(y >= 0, y, NEG_SLOPE * y)


def _make_case(key, B, IN, OUT):
    kx, kw, kb, kg, kbeta = jax.random.split(key, 5)
    bound = 1.0 / (IN ** 0.5)
    x = jax.random.normal(kx, (B, IN), dtype=jnp.float32)
    weight = jax.random.uniform(kw, (OUT, IN), minval=-bound, maxval=bound,
                                dtype=jnp.float32)
    bias = jax.random.uniform(kb, (OUT,), minval=-bound, maxval=bound,
                              dtype=jnp.float32)
    gamma = jax.random.uniform(kg, (OUT,), minval=0.5, maxval=1.5,
                               dtype=jnp.float32)
    beta = 0.1 * jax.random.normal(kbeta, (OUT,), dtype=jnp.float32)
    return x, weight, bias, gamma, beta


def _check(out, x, weight, bias, gamma, beta, tag):
    ref_bf = _reference(x, weight, bias, gamma, beta, bf16_inputs=True)
    ref_f32 = _reference(x, weight, bias, gamma, beta, bf16_inputs=False)
    assert out.shape == ref_f32.shape
    assert jnp.allclose(out, ref_bf, atol=2e-3, rtol=2e-3), f"{tag}: mismatch vs bf16 ref"
    assert jnp.allclose(out, ref_f32, atol=5e-2, rtol=5e-2), f"{tag}: mismatch vs f32 ref"


if __name__ == "__main__":
    key = jax.random.PRNGKey(0)
    k1, k2 = jax.random.split(key)

    # --- Small shapes consistent with the module: batch=8, in=32, out=64 ----
    B, IN, OUT = 8, 32, 64
    x, weight, bias, gamma, beta = _make_case(k1, B, IN, OUT)
    params = prepare_params(weight, gamma, beta, bias)
    assert params["mode"] == "fused"
    out = jax.block_until_ready(linear_fc_forward(x, params))
    _check(out, x, weight, bias, gamma, beta, "small/fused")

    # --- Larger shapes: multi OUT-tile fused path ----------------------------
    B2, IN2, OUT2 = 128, 1024, 512
    x2, weight2, bias2, gamma2, beta2 = _make_case(k2, B2, IN2, OUT2)
    params2 = prepare_params(weight2, gamma2, beta2, bias2)
    assert params2["mode"] == "fused"
    out2 = jax.block_until_ready(linear_fc_forward(x2, params2))
    _check(out2, x2, weight2, bias2, gamma2, beta2, "large/fused")

    # --- Force the K-tiled accumulator fallback (tiny artificial budget) ----
    params3 = prepare_params(weight2, gamma2, beta2, bias2,
                             vmem_budget_bytes=2 << 20)
    assert params3["mode"] == "ktiled"
    out3 = jax.block_until_ready(linear_fc_forward(x2, params3))
    _check(out3, x2, weight2, bias2, gamma2, beta2, "large/ktiled")

    print("KERNEL_OK")
</pallas_src>

<mosaic_0001>
module attributes {stable_mosaic.version = 11 : i64} {
  func.func @_fused_kernel(%arg0: i32, %arg1: memref<8x32xf32, #tpu.memory_space<vmem>>, %arg2: memref<1x32x128xbf16, #tpu.memory_space<vmem>>, %arg3: memref<1x128xf32, #tpu.memory_space<vmem>>, %arg4: memref<1x128xf32, #tpu.memory_space<vmem>>, %arg5: memref<8x128xf32, #tpu.memory_space<vmem>>) attributes {dimension_semantics = [#tpu.dimension_semantics<parallel>], iteration_bounds = array<i64: 1>, scalar_prefetch = 0 : i64, scratch_operands = 0 : i64, tpu.core_type = #tpu.core_type<tc>, window_params = [{pipeline_mode = #tpu.pipeline_mode<synchronous>, transform_indices = @transform_0, window_bounds = array<i64: 8, 32>}, {transform_indices = @transform_1, window_bounds = array<i64: 1, 32, 128>}, {transform_indices = @transform_2, window_bounds = array<i64: 1, 128>}, {transform_indices = @transform_3, window_bounds = array<i64: 1, 128>}, {transform_indices = @transform_4, window_bounds = array<i64: 8, 128>}]} {
    %c0 = arith.constant 0 : index
    %c0_0 = arith.constant 0 : index
    %0 = vector.load %arg1[%c0, %c0_0] : memref<8x32xf32, #tpu.memory_space<vmem>>, vector<8x32xf32>
    %1 = arith.truncf %0 : vector<8x32xf32> to vector<8x32xbf16>
    %c0_1 = arith.constant 0 : index
    %c0_2 = arith.constant 0 : index
    %c0_3 = arith.constant 0 : index
    %2 = vector.load %arg2[%c0_1, %c0_2, %c0_3] : memref<1x32x128xbf16, #tpu.memory_space<vmem>>, vector<1x32x128xbf16>
    %3 = vector.shape_cast %2 : vector<1x32x128xbf16> to vector<32x128xbf16>
    %cst = arith.constant dense<0.000000e+00> : vector<8x128xf32>
    %4 = tpu.matmul %1, %3, %cst {dimension_numbers = #tpu.dot_dimension_numbers<[1], [0], [0], [1], [0, 0, 1, 1], [], []>} : vector<8x32xbf16>, vector<32x128xbf16>, vector<8x128xf32> -> vector<8x128xf32>
    %cst_4 = arith.constant dense<0.000000e+00> : vector<128xf32>
    %5 = vector.multi_reduction <add>, %4, %cst_4 [0] : vector<8x128xf32> to vector<128xf32>
    %6 = vector.shape_cast %5 : vector<128xf32> to vector<1x128xf32>
    %cst_5 = arith.constant 1.250000e-01 : f32
    %7 = vector.broadcast %cst_5 : f32 to vector<1x128xf32>
    %8 = arith.mulf %6, %7 : vector<1x128xf32>
    %9 = vector.broadcast %8 : vector<1x128xf32> to vector<8x128xf32>
    %10 = arith.subf %4, %9 : vector<8x128xf32>
    %11 = arith.mulf %10, %10 : vector<8x128xf32>
    %cst_6 = arith.constant dense<0.000000e+00> : vector<128xf32>
    %12 = vector.multi_reduction <add>, %11, %cst_6 [0] : vector<8x128xf32> to vector<128xf32>
    %13 = vector.shape_cast %12 : vector<128xf32> to vector<1x128xf32>
    %cst_7 = arith.constant 1.250000e-01 : f32
    %14 = vector.broadcast %cst_7 : f32 to vector<1x128xf32>
    %15 = arith.mulf %13, %14 : vector<1x128xf32>
    %c0_8 = arith.constant 0 : index
    %c0_9 = arith.constant 0 : index
    %16 = vector.load %arg3[%c0_8, %c0_9] : memref<1x128xf32, #tpu.memory_space<vmem>>, vector<1x128xf32>
    %cst_10 = arith.constant 9.99999974E-6 : f32
    %17 = vector.broadcast %cst_10 : f32 to vector<1x128xf32>
    %18 = arith.addf %15, %17 : vector<1x128xf32>
    %19 = math.rsqrt %18 : vector<1x128xf32>
    %20 = arith.mulf %16, %19 : vector<1x128xf32>
    %21 = vector.broadcast %20 : vector<1x128xf32> to vector<8x128xf32>
    %22 = arith.mulf %10, %21 : vector<8x128xf32>
    %c0_11 = arith.constant 0 : index
    %c0_12 = arith.constant 0 : index
    %23 = vector.load %arg4[%c0_11, %c0_12] : memref<1x128xf32, #tpu.memory_space<vmem>>, vector<1x128xf32>
    %24 = vector.broadcast %23 : vector<1x128xf32> to vector<8x128xf32>
    %25 = arith.addf %22, %24 : vector<8x128xf32>
    %cst_13 = arith.constant 0.000000e+00 : f32
    %26 = vector.broadcast %cst_13 : f32 to vector<8x128xf32>
    %27 = arith.cmpf oge, %25, %26 : vector<8x128xf32>
    %cst_14 = arith.constant 0.00999999977 : f32
    %28 = vector.broadcast %cst_14 : f32 to vector<8x128xf32>
    %29 = arith.mulf %28, %25 : vector<8x128xf32>
    %30 = arith.select %27, %25, %29 : vector<8x128xi1>, vector<8x128xf32>
    %c0_15 = arith.constant 0 : index
    %c0_16 = arith.constant 0 : index
    %31 = vector.load %arg5[%c0_15, %c0_16] : memref<8x128xf32, #tpu.memory_space<vmem>>, vector<8x128xf32>
    tpu.vector_store %arg5[%c0_15, %c0_16], %30 {strides = array<i32>} : memref<8x128xf32, #tpu.memory_space<vmem>>, vector<8x128xf32>,
    return
  }
  func.func @transform_0(%arg0: i32) -> (i32, i32) {
    %c0_i32 = arith.constant 0 : i32
    %c0_i32_0 = arith.constant 0 : i32
    %c0_i32_1 = arith.constant 0 : i32
    return %c0_i32, %c0_i32_0 : i32, i32
  }
  func.func @transform_1(%arg0: i32) -> (i32, i32, i32) {
    %c0_i32 = arith.constant 0 : i32
    %c0_i32_0 = arith.constant 0 : i32
    %c0_i32_1 = arith.constant 0 : i32
    return %arg0, %c0_i32, %c0_i32_0 : i32, i32, i32
  }
  func.func @transform_2(%arg0: i32) -> (i32, i32) {
    %c0_i32 = arith.constant 0 : i32
    %c0_i32_0 = arith.constant 0 : i32
    return %c0_i32, %arg0 : i32, i32
  }
  func.func @transform_3(%arg0: i32) -> (i32, i32) {
    %c0_i32 = arith.constant 0 : i32
    %c0_i32_0 = arith.constant 0 : i32
    return %c0_i32, %arg0 : i32, i32
  }
  func.func @transform_4(%arg0: i32) -> (i32, i32) {
    %c0_i32 = arith.constant 0 : i32
    %c0_i32_0 = arith.constant 0 : i32
    return %c0_i32, %arg0 : i32, i32
  }
}

</mosaic_0001>

<llo_original>
// kernel: tpu_custom_call.1
$region0: #{tpu_custom_call.1}
  #allocation0 [shape = 'u32[]', space=smem, size = 0x4, offset = 0x4, fixed_abs, tag = 'smem constant byte address 0x4 - core index']
  #allocation1 [shape = 'u32[144,128]{1,0:T(1,128)}', space=vmem, size = 0x12000, scoped, tag = 'internal scratch']
  %s0 = inlined_call_operand.hbm [shape: f32[8,32], index: 0, kind: input, shape index: {}]
  %s1 = inlined_call_operand.hbm [shape: bf16[1,32,128], index: 1, kind: input, shape index: {}]
  %s2 = inlined_call_operand.vmem [shape: f32[1,128], index: 2, kind: input, shape index: {}]
  %s3 = inlined_call_operand.vmem [shape: f32[1,128], index: 3, kind: input, shape index: {}]
  %s4 = inlined_call_operand.hbm [shape: f32[8,128], index: 4, kind: output, shape index: {}]
  %s5 = sld [smem:[#allocation0]]
  $region34: #{tpu_custom_call.1} parent=0
    _
  %s7 = ssub.s32 1, %s5
  %s8 = scalar_select 0, %s7, %s5
  $region1: #{tpu_custom_call.1} parent=0
    #allocation2 [shape = 'u8[4096]{0}', space=vmem, size = 0x1000, scoped, tag = 'input window, operand 0, single buffered']
    #allocation3 [shape = 's32[1]{0}', space=sflag, size = 0x4, scoped, tag = 'scoped memory for tpu_custom_call.1']
    #allocation4 [shape = 's32[1]{0}', space=sflag, size = 0x4, scoped, tag = 'scoped memory for tpu_custom_call.1']
    #allocation5 [shape = 'u8[8192]{0}', space=vmem, size = 0x2000, scoped, tag = 'input window, operand 1, single buffered']
    #allocation6 [shape = 's32[1]{0}', space=sflag, size = 0x4, scoped, tag = 'scoped memory for tpu_custom_call.1']
    #allocation7 [shape = 'u8[4096]{0}', space=vmem, size = 0x1000, scoped, tag = 'output window, operand 0, single buffered']
    %9 = vsyncpa [#allocation3], 0
    %10 = vsyncpa [#allocation6], 0
    %11 = vsyncpa [#allocation4], 0
    // Predicated region
    $region2: #{tpu_custom_call.1} parent=1 // pred_check
      _
    $region3: #{tpu_custom_call.1} parent=1 // pred_check_branch
      %13 = sbr.rel (0) target = $region5
    $region4: #{tpu_custom_call.1} parent=1 // pred_region
      %s15 = ssub.s32 128, 128
      %16 = vsyncadd [#allocation3], %s15
      %s18 = sshll.u32 [#allocation2], 4
      %s19 = int_to_ptr.vmem [resolvable:$true] %s18
      %21 = dma.hbm_to_vmem [thread:$0]  %s0, 128, %s19, [#allocation3]
    $region5: #{tpu_custom_call.1} parent=1 // pred_fallthru
      _
    // Predicated region
    $region6: #{tpu_custom_call.1} parent=1 // pred_check
      _
    $region7: #{tpu_custom_call.1} parent=1 // pred_check_branch
      %23 = sbr.rel (0) target = $region9
    $region8: #{tpu_custom_call.1} parent=1 // pred_region
      %s25 = ssub.s32 256, 256
      %26 = vsyncadd [#allocation6], %s25
      %s27 = sshll.u32 [#allocation5], 4
      %s28 = int_to_ptr.vmem [resolvable:$true] %s27
      %33 = dma.hbm_to_vmem [thread:$0]  %s1, 256, %s28, [#allocation6], 64, 64, 4
    $region9: #{tpu_custom_call.1} parent=1 // pred_fallthru
      _
    // Predicated region
    $region10: #{tpu_custom_call.1} parent=1 // pred_check
      _
    $region11: #{tpu_custom_call.1} parent=1 // pred_check_branch
      %35 = sbr.rel (0) target = $region13
    $region12: #{tpu_custom_call.1} parent=1 // pred_region
      _
    $region13: #{tpu_custom_call.1} parent=1 // pred_fallthru
      _
    // Predicated region
    $region14: #{tpu_custom_call.1} parent=1 // pred_check
      _
    $region15: #{tpu_custom_call.1} parent=1 // pred_check_branch
      %37 = sbr.rel (0) target = $region17
    $region16: #{tpu_custom_call.1} parent=1 // pred_region
      _
    $region17: #{tpu_custom_call.1} parent=1 // pred_fallthru
      _
    // Predicated region
    $region18: #{tpu_custom_call.1} parent=1 // pred_check
      _
    $region19: #{tpu_custom_call.1} parent=1 // pred_check_branch
      %39 = sbr.rel (0) target = $region21
    $region20: #{tpu_custom_call.1} parent=1 // pred_region
      %40 = dma.done [#allocation3], 128
    $region21: #{tpu_custom_call.1} parent=1 // pred_fallthru
      _
    // Predicated region
    $region22: #{tpu_custom_call.1} parent=1 // pred_check
      _
    $region23: #{tpu_custom_call.1} parent=1 // pred_check_branch
      %42 = sbr.rel (0) target = $region25
    $region24: #{tpu_custom_call.1} parent=1 // pred_region
      %43 = dma.done [#allocation6], 256
    $region25: #{tpu_custom_call.1} parent=1 // pred_fallthru
      _
    %v45 = vld [vmem:[#allocation2] sm:$0xff]
    %v46 = vpack.c.bf16 %v45, %v45
    %v47 = vld [vmem:[#allocation5] sm:$0xf]
    %v48 = vld [vmem:[#allocation5 + $0x4] sm:$0xf]
    %v49 = vld [vmem:[#allocation5 + $0x8] sm:$0xf]
    %v50 = vld [vmem:[#allocation5 + $0xc] sm:$0xf]
    %v55 = vunpack.c.l.b16 %v47
    %v56 = vunpack.c.l.b16 %v48
    %v57 = vunpack.c.l.b16 %v49
    %v58 = vunpack.c.l.b16 %v50
    %v59 = vpack.c.b16 %v56, %v55
    %v60 = vpack.c.b16 %v58, %v57
    %vm63 = vcmask 261120
    %v65 = vsel %vm63, %v46, 0
    %67 = vmatprep.subr.bf16.mxu0 0
    %68 = vmatpush1.bf16.msra.mxu0 0
    %69 = vmatprep.subr.bf16.mxu0 0
    %70 = vmatpush1.bf16.msra.mxu0 0
    %71 = vmatprep.subr.bf16.mxu0 0
    %72 = vmatpush1.bf16.msra.mxu0 0
    %73 = vmatprep.subr.bf16.mxu0 0
    %74 = vmatpush1.bf16.msra.mxu0 0
    %75 = vmatprep.subr.bf16.mxu0 0
    %76 = vmatpush1.bf16.msra.mxu0 0
    %77 = vmatprep.subr.bf16.mxu0 0
    %78 = vmatpush1.bf16.msra.mxu0 0
    %79 = vmatprep.subr.bf16.mxu0 0
    %80 = vmatpush1.bf16.msra.mxu0 %v60
    %81 = vmatprep.subr.bf16.mxu0 0
    %82 = vmatpush1.bf16.msra.mxu0 %v59
    %83 = vmatprep.subr.bf16.mxu0 0
    %84 = vmatpush2.bf16.msra.mxu0 0
    %85 = vmatprep.subr.bf16.mxu0 0
    %86 = vmatpush2.bf16.msra.mxu0 0
    %87 = vmatprep.subr.bf16.mxu0 0
    %88 = vmatpush2.bf16.msra.mxu0 0
    %89 = vmatprep.subr.bf16.mxu0 0
    %90 = vmatpush2.bf16.msra.mxu0 0
    %91 = vmatprep.subr.bf16.mxu0 0
    %92 = vmatpush2.bf16.msra.mxu0 0
    %93 = vmatprep.subr.bf16.mxu0 0
    %94 = vmatpush2.bf16.msra.mxu0 0
    %95 = vmatprep.subr.bf16.mxu0 0
    %96 = vmatpush2.bf16.msra.mxu0 0
    %97 = vmatprep.subr.bf16.mxu0 0
    %98 = vmatpush2.bf16.msra.mxu0 0
    %99 = vmatprep.mubr.bf16.mxu0 0
    %100 = vmatmul.mubr.bf16.gmra.mxu0 %v65
    %v101 = vpop.f32.mrf.mxu0
    %v102 = vadd.f32 0.0, %v101
    %v103 = vpop.f32.mrf.mxu0
    %v104 = vpop.f32.mrf.mxu0
    %v105 = vpop.f32.mrf.mxu0
    %106 = vdwg.mxu0
    %v107 = vrot.slane %v102, 4
    %v108 = vadd.f32 %v102, %v107
    %v109 = vrot.slane %v108, 2
    %v110 = vadd.f32 %v108, %v109
    %v111 = vrot.slane %v110, 1
    %v112 = vadd.f32 %v110, %v111
    %v113 = vmul.f32 %v112, 0.125
    %v114 = vsub.f32 %v102, %v113
    %v115 = vmul.f32 %v114, %v114
    %v116 = vrot.slane %v115, 4
    %v117 = vadd.f32 %v115, %v116
    %v118 = vrot.slane %v117, 2
    %v119 = vadd.f32 %v117, %v118
    %v120 = vrot.slane %v119, 1
    %v121 = vadd.f32 %v119, %v120
    %v122 = vmul.f32 %v121, 0.125
    %v123 = vld [vmem:[%s2] sm:$0x1]
    %v124 = vadd.f32 %v122, 1e-05
    %v125 = vrsqrt.pop %v124
    %v126 = vmul.f32 %v123, %v125
    %v128 = vlaneseq
    %v129 = vshrl.u32 %v128, 7
    %v130 = vsub.s32 0, %v129
    %v131 = vrot.slane %v126, %v130
    %v133 = vmul.f32 %v114, %v131
    %v134 = vld [vmem:[%s3] sm:$0x1]
    %v136 = vlaneseq
    %v137 = vshrl.u32 %v136, 7
    %v138 = vsub.s32 0, %v137
    %v139 = vrot.slane %v134, %v138
    %v141 = vadd.f32 %v133, %v139
    %vm142 = vcmp.ge.f32.partialorder %v141, 0.0
    %v143 = vmul.f32 %v141, 0.01
    %v144 = vsel %vm142, %v141, %v143
    %145 = vst [vmem:[#allocation7] sm:$0xff] %v144
    // Predicated region
    $region26: #{tpu_custom_call.1} parent=1 // pred_check
      _
    $region27: #{tpu_custom_call.1} parent=1 // pred_check_branch
      %147 = sbr.rel (0) target = $region29
    $region28: #{tpu_custom_call.1} parent=1 // pred_region
      %s149 = ssub.s32 128, 128
      %150 = vsyncadd [#allocation4], %s149
      %s152 = sshll.u32 [#allocation7], 4
      %s153 = int_to_ptr.vmem [resolvable:$true] %s152
      %155 = dma.vmem_to_hbm [thread:$0]  %s153, 128, %s4, [#allocation4]
    $region29: #{tpu_custom_call.1} parent=1 // pred_fallthru
      _
    // Predicated region
    $region30: #{tpu_custom_call.1} parent=1 // pred_check
      _
    $region31: #{tpu_custom_call.1} parent=1 // pred_check_branch
      %157 = sbr.rel (0) target = $region33
    $region32: #{tpu_custom_call.1} parent=1 // pred_region
      %158 = dma.done [#allocation4], 128
    $region33: #{tpu_custom_call.1} parent=1 // pred_fallthru
      _
    %159 = vsyncpa [#allocation3], 1
    %160 = vsyncpa [#allocation6], 1
    %161 = vsyncpa [#allocation4], 1

</llo_original>
